<compile_context>
chip_gen: v7x
topology: tpu7x:2x2x1
jax: 0.10.0
libtpu: 0.0.40
codegen_flags: <defaults>
</compile_context>

<pallas_src>
import functools

import numpy as np
import jax
import jax.numpy as jnp
from jax.experimental import pallas as pl
from jax.experimental.pallas import tpu as pltpu

ZERO_INIT = False   # PyTorch module uses True; False gives a non-degenerate test
TB_MAX = 512        # max rows per batch tile (keeps streamed w_h MXU-bound)


def _cdiv(a, b):
    return -(-a // b)


def _round_up(n, m):
    return _cdiv(n, m) * m


def _activation(x):
    # TODO(synk): `activation` is a constructor argument of the PyTorch module;
    # fixed to ReLU here.
    return jnp.maximum(x, 0.0)


def _vmem_capacity_bytes():
    try:
        return int(pltpu.get_tpu_info().vmem_capacity_bytes)
    except Exception:
        return 64 << 20   # conservative default: v7x per-TensorCore VMEM


def _prefer_256_padding():
    # v6e/v7x MXU is 2x256x256: avoid K/N dims that are odd multiples of 128.
    try:
        kind = jax.devices()[0].device_kind.lower()
        return ("v6" in kind) or ("v7" in kind)
    except Exception:
        return False


def _pad_dim(d, prefer_256):
    p = _round_up(d, 128)
    if prefer_256 and p > 128 and (p // 128) % 2 == 1:
        p = _round_up(d, 256)
    return p


# ----------------------------- kernels ---------------------------------------


def _mlp_kernel(x_ref, w_in_ref, b_in_ref, w_h_ref, b_h_ref, w_out_ref,
                b_out_ref, o_ref, h_ref, *, num_layer, resident_wh):
    """Grid = (batch_tiles, num_layer).

    x_ref:    (TB, DI)  bf16       w_in_ref:  (DI, H) bf16    b_in_ref: (1, H) f32
    w_h_ref:  (L, H, H) bf16 (resident) or (1, H, H) bf16 (streamed)
    b_h_ref:  (L, 1, H) f32 (resident)
    w_out_ref:(H, DO)   bf16       b_out_ref: (1, DO) f32
    o_ref:    (TB, DO)             h_ref:     (TB, H) bf16 scratch
    """
    l = pl.program_id(1)

    @pl.when(l == 0)
    def _():
        # fc_in + activation (bf16 operands, f32 accumulate / bias-add / ReLU).
        h0 = jnp.dot(x_ref[...], w_in_ref[...],
                     preferred_element_type=jnp.float32)
        h_ref[...] = _activation(h0 + b_in_ref[...]).astype(h_ref.dtype)

    # Hidden layer `l`.
    w_idx = l if resident_wh else 0
    hh = jnp.dot(h_ref[...], w_h_ref[w_idx],
                 preferred_element_type=jnp.float32)
    h_ref[...] = _activation(hh + b_h_ref[l]).astype(h_ref.dtype)

    @pl.when(l == num_layer - 1)
    def _():
        # fc_out (no activation); DO is a multiple of 128 -> lane-dense store.
        out = jnp.dot(h_ref[...], w_out_ref[...],
                      preferred_element_type=jnp.float32)
        o_ref[...] = (out + b_out_ref[...]).astype(o_ref.dtype)


def _mlp_kernel_no_hidden(x_ref, w_in_ref, b_in_ref, w_out_ref, b_out_ref,
                          o_ref):
    """num_layer == 0 path: fc_in -> act -> fc_out."""
    h0 = jnp.dot(x_ref[...], w_in_ref[...], preferred_element_type=jnp.float32)
    h = _activation(h0 + b_in_ref[...]).astype(jnp.bfloat16)
    out = jnp.dot(h, w_out_ref[...], preferred_element_type=jnp.float32)
    o_ref[...] = (out + b_out_ref[...]).astype(o_ref.dtype)


# ----------------------------- wrapper ----------------------------------------


def mlp_forward(x, padded_params, num_layer, output_dim, *,
                out_dtype=jnp.float32, force_stream=False):
    """x: (B, input_dim) float.  padded_params: output of pad_params()."""
    w_in, b_in, w_h, b_h, w_out, b_out = padded_params
    B, D_in = x.shape
    DI, H = w_in.shape
    DO = w_out.shape[1]
    L = num_layer
    out_isize = np.dtype(out_dtype).itemsize

    # Balanced batch tiles: nb = cdiv(B, TB_MAX); TB a 16-row multiple (bf16
    # sublane packing).  Avoids mostly-empty tiles and weight re-streaming.
    nb = max(1, _cdiv(B, TB_MAX))
    TB = _round_up(_cdiv(B, nb), 16)
    B_pad = nb * TB

    # Pad x (extra cols hit zero-padded weight rows -> no effect); bf16 halves
    # HBM traffic.
    x_p = jnp.zeros((B_pad, DI), jnp.bfloat16)
    x_p = x_p.at[:B, :D_in].set(x.astype(jnp.bfloat16))

    vmem_cap = _vmem_capacity_bytes()

    # Conservative VMEM footprint (2 buffers per auto-pipelined operand).
    base_vmem = (2 * TB * DI * 2          # x tiles (bf16)
                 + 2 * DI * H * 2         # fc_in weight (resident)
                 + 2 * H * 4              # fc_in bias
                 + 2 * max(L, 1) * H * 4  # hidden biases (resident)
                 + 2 * H * DO * 2         # fc_out weight (resident)
                 + 2 * DO * 4             # fc_out bias
                 + 2 * TB * DO * out_isize  # out tiles
                 + TB * H * 2)            # h scratch (bf16)
    wh_bytes = L * H * H * 2
    resident_fits = (base_vmem + 2 * wh_bytes) <= int(0.7 * vmem_cap)
    resident_wh = (L > 0) and resident_fits and (not force_stream)

    wh_vmem = 0
    if L > 0:
        wh_vmem = 2 * (wh_bytes if resident_wh else H * H * 2)
    vmem_bytes = base_vmem + wh_vmem
    # TODO(synk): for very large H where even the streamed 2*H*H*2 double buffer
    # approaches VMEM capacity (v7x), add a column-tile grid axis over w_h.
    vmem_limit = int(vmem_bytes * 1.25) + (2 << 20)
    vmem_limit = max(4 << 20, min(vmem_limit, vmem_cap - (2 << 20)))

    flops = 2 * B_pad * (DI * H + L * H * H + H * DO)
    wh_hbm = wh_bytes * (1 if resident_wh else nb)   # streamed -> re-fetched per tile
    bytes_accessed = (B_pad * DI * 2 + DI * H * 2 + H * DO * 2 + wh_hbm
                      + H * 4 + L * H * 4 + DO * 4 + B_pad * DO * out_isize)
    cost = pl.CostEstimate(flops=flops, transcendentals=0,
                           bytes_accessed=bytes_accessed)

    if L == 0:
        grid_spec = pltpu.PrefetchScalarGridSpec(
            num_scalar_prefetch=0,
            grid=(nb,),
            in_specs=[
                pl.BlockSpec((TB, DI), lambda b: (b, 0)),
                pl.BlockSpec((DI, H), lambda b: (0, 0)),
                pl.BlockSpec((1, H), lambda b: (0, 0)),
                pl.BlockSpec((H, DO), lambda b: (0, 0)),
                pl.BlockSpec((1, DO), lambda b: (0, 0)),
            ],
            out_specs=pl.BlockSpec((TB, DO), lambda b: (b, 0)),
        )
        out_p = pl.pallas_call(
            _mlp_kernel_no_hidden,
            out_shape=jax.ShapeDtypeStruct((B_pad, DO), out_dtype),
            grid_spec=grid_spec,
            compiler_params=pltpu.CompilerParams(
                dimension_semantics=("parallel",),
                vmem_limit_bytes=vmem_limit),
            cost_estimate=cost,
        )(x_p, w_in, b_in, w_out, b_out)
    else:
        if resident_wh:
            # Whole hidden stack VMEM-resident; fetched from HBM exactly once.
            wh_spec = pl.BlockSpec((L, H, H), lambda b, l: (0, 0, 0))
        else:
            # Streamed per layer (double-buffered), re-fetched per batch tile.
            wh_spec = pl.BlockSpec((1, H, H), lambda b, l: (l, 0, 0))
        grid_spec = pltpu.PrefetchScalarGridSpec(
            num_scalar_prefetch=0,
            grid=(nb, L),
            in_specs=[
                pl.BlockSpec((TB, DI), lambda b, l: (b, 0)),        # x
                pl.BlockSpec((DI, H), lambda b, l: (0, 0)),         # w_in (resident)
                pl.BlockSpec((1, H), lambda b, l: (0, 0)),          # b_in (resident)
                wh_spec,                                            # w_h
                pl.BlockSpec((L, 1, H), lambda b, l: (0, 0, 0)),    # b_h (resident)
                pl.BlockSpec((H, DO), lambda b, l: (0, 0)),         # w_out (resident)
                pl.BlockSpec((1, DO), lambda b, l: (0, 0)),         # b_out (resident)
            ],
            out_specs=pl.BlockSpec((TB, DO), lambda b, l: (b, 0)),
            scratch_shapes=[pltpu.VMEM((TB, H), jnp.bfloat16)],
        )
        out_p = pl.pallas_call(
            functools.partial(_mlp_kernel, num_layer=L,
                              resident_wh=resident_wh),
            out_shape=jax.ShapeDtypeStruct((B_pad, DO), out_dtype),
            grid_spec=grid_spec,
            compiler_params=pltpu.CompilerParams(
                dimension_semantics=("parallel", "arbitrary"),
                vmem_limit_bytes=vmem_limit),
            cost_estimate=cost,
        )(x_p, w_in, b_in, w_h, b_h, w_out, b_out)

    return out_p[:B, :output_dim]


# ----------------------------- params -----------------------------------------


def init_params(key, input_dim, hidden_dim, output_dim, num_layer,
                zero_init=False):
    """Mirror of MLP._initialize_weights: uniform(+-sqrt(6/fan_in)) weights,
    zero bias.  Weights stored as (in_features, out_features)."""
    def uniform(k, shape, fan_in):
        limit = 0.0 if zero_init else (6.0 / fan_in) ** 0.5
        return jax.random.uniform(k, shape, jnp.float32, -limit, limit)

    k_in, k_h, k_out = jax.random.split(key, 3)
    w_in = uniform(k_in, (input_dim, hidden_dim), input_dim)
    b_in = jnp.zeros((hidden_dim,), jnp.float32)
    w_h = uniform(k_h, (max(num_layer, 1), hidden_dim, hidden_dim),
                  hidden_dim)[:num_layer]
    b_h = jnp.zeros((num_layer, hidden_dim), jnp.float32)
    w_out = uniform(k_out, (hidden_dim, output_dim), hidden_dim)
    b_out = jnp.zeros((output_dim,), jnp.float32)
    return (w_in, b_in, w_h, b_h, w_out, b_out)


def pad_params(params, num_layer, prefer_256=None):
    """Zero-pad lane dims to multiples of 128 (256 on v6e/v7x when the 128-pad
    would be an odd multiple of 128); weights -> bf16, biases -> f32."""
    if prefer_256 is None:
        prefer_256 = _prefer_256_padding()
    w_in, b_in, w_h, b_h, w_out, b_out = params
    D_in, H = w_in.shape
    D_out = w_out.shape[1]
    DI = _pad_dim(D_in, prefer_256)
    HP = _pad_dim(H, prefer_256)
    DO = _pad_dim(D_out, prefer_256)

    def pad2(a, r, c, dtype):
        out = jnp.zeros((r, c), dtype)
        return out.at[:a.shape[0], :a.shape[1]].set(a.astype(dtype))

    w_in_p = pad2(w_in, DI, HP, jnp.bfloat16)
    b_in_p = pad2(b_in[None, :], 1, HP, jnp.float32)
    w_out_p = pad2(w_out, HP, DO, jnp.bfloat16)
    b_out_p = pad2(b_out[None, :], 1, DO, jnp.float32)

    L = max(num_layer, 1)  # never materialize zero-extent arrays
    w_h_p = jnp.zeros((L, HP, HP), jnp.bfloat16)
    b_h_p = jnp.zeros((L, 1, HP), jnp.float32)
    if num_layer > 0:
        w_h_p = w_h_p.at[:num_layer, :H, :H].set(w_h.astype(jnp.bfloat16))
        b_h_p = b_h_p.at[:num_layer, 0, :H].set(b_h.astype(jnp.float32))
    return (w_in_p, b_in_p, w_h_p, b_h_p, w_out_p, b_out_p)


# ----------------------------- reference --------------------------------------


def mlp_reference(x, padded_params, num_layer, output_dim):
    """Pure-JAX reference mirroring the kernel's bf16-operand/f32-accumulate math."""
    w_in, b_in, w_h, b_h, w_out, b_out = padded_params
    B, D_in = x.shape
    DI = w_in.shape[0]
    xb = jnp.zeros((B, DI), jnp.bfloat16).at[:, :D_in].set(
        x.astype(jnp.bfloat16))

    def mm(a, w):
        return jnp.dot(a.astype(jnp.bfloat16), w,
                       preferred_element_type=jnp.float32)

    h = _activation(mm(xb, w_in) + b_in)
    for i in range(num_layer):
        h = _activation(mm(h, w_h[i]) + b_h[i])
    out = mm(h, w_out) + b_out
    return out[:, :output_dim]


# ----------------------------- test -------------------------------------------


if __name__ == "__main__":
    batch = 8
    input_dim = 16
    hidden_dim = 32
    output_dim = 8
    num_layer = 2

    key = jax.random.PRNGKey(0)
    k_x, k_p = jax.random.split(key)
    x = jax.random.normal(k_x, (batch, input_dim), jnp.float32)
    params = init_params(k_p, input_dim, hidden_dim, output_dim, num_layer,
                         zero_init=ZERO_INIT)
    params_p = pad_params(params, num_layer)

    # Default path (hidden weights resident at these sizes).
    out = jax.block_until_ready(mlp_forward(x, params_p, num_layer, output_dim))
    ref = mlp_reference(x, params_p, num_layer, output_dim)
    assert out.shape == (batch, output_dim), out.shape
    assert jnp.allclose(out, ref, atol=1e-3, rtol=1e-3), "mismatch (resident w_h)"

    # Streamed-weights path (what large hidden dims would use).
    out_s = jax.block_until_ready(
        mlp_forward(x, params_p, num_layer, output_dim, force_stream=True))
    assert jnp.allclose(out_s, ref, atol=1e-3, rtol=1e-3), "mismatch (streamed w_h)"

    # Multi-batch-tile path (nb > 1, balanced tiles).
    xb_big = jax.random.normal(k_x, (1030, input_dim), jnp.float32)
    out_b = jax.block_until_ready(
        mlp_forward(xb_big, params_p, num_layer, output_dim))
    ref_b = mlp_reference(xb_big, params_p, num_layer, output_dim)
    assert jnp.allclose(out_b, ref_b, atol=1e-3, rtol=1e-3), "mismatch (multi-tile)"

    # num_layer == 0 path (separate kernel, no hidden weights).
    out0 = jax.block_until_ready(mlp_forward(x, params_p, 0, output_dim))
    ref0 = mlp_reference(x, params_p, 0, output_dim)
    assert jnp.allclose(out0, ref0, atol=1e-3, rtol=1e-3), "mismatch (L=0)"

    print("KERNEL_OK")
</pallas_src>

<mosaic_0001>
module attributes {stable_mosaic.version = 11 : i64} {
  func.func @_mlp_kernel(%arg0: i32, %arg1: i32, %arg2: memref<16x128xbf16, #tpu.memory_space<vmem>>, %arg3: memref<128x128xbf16, #tpu.memory_space<vmem>>, %arg4: memref<1x128xf32, #tpu.memory_space<vmem>>, %arg5: memref<2x128x128xbf16, #tpu.memory_space<vmem>>, %arg6: memref<2x1x128xf32, #tpu.memory_space<vmem>>, %arg7: memref<128x128xbf16, #tpu.memory_space<vmem>>, %arg8: memref<1x128xf32, #tpu.memory_space<vmem>>, %arg9: memref<16x128xf32, #tpu.memory_space<vmem>>, %arg10: memref<16x128xbf16, #tpu.memory_space<vmem>>) attributes {dimension_semantics = [#tpu.dimension_semantics<parallel>, #tpu.dimension_semantics<arbitrary>], iteration_bounds = array<i64: 1, 2>, scalar_prefetch = 0 : i64, scratch_operands = 1 : i64, tpu.core_type = #tpu.core_type<tc>, window_params = [{transform_indices = @transform_0, window_bounds = array<i64: 16, 128>}, {pipeline_mode = #tpu.pipeline_mode<synchronous>, transform_indices = @transform_1, window_bounds = array<i64: 128, 128>}, {pipeline_mode = #tpu.pipeline_mode<synchronous>, transform_indices = @transform_2, window_bounds = array<i64: 1, 128>}, {pipeline_mode = #tpu.pipeline_mode<synchronous>, transform_indices = @transform_3, window_bounds = array<i64: 2, 128, 128>}, {pipeline_mode = #tpu.pipeline_mode<synchronous>, transform_indices = @transform_4, window_bounds = array<i64: 2, 1, 128>}, {pipeline_mode = #tpu.pipeline_mode<synchronous>, transform_indices = @transform_5, window_bounds = array<i64: 128, 128>}, {pipeline_mode = #tpu.pipeline_mode<synchronous>, transform_indices = @transform_6, window_bounds = array<i64: 1, 128>}, {transform_indices = @transform_7, window_bounds = array<i64: 16, 128>}]} {
    %c0_i32 = arith.constant 0 : i32
    %0 = arith.cmpi eq, %arg1, %c0_i32 : i32
    %1 = arith.extui %0 : i1 to i32
    %c0_i32_0 = arith.constant 0 : i32
    %2 = arith.cmpi ne, %1, %c0_i32_0 : i32
    scf.if %2 {
      %c0_10 = arith.constant 0 : index
      %c0_11 = arith.constant 0 : index
      %20 = vector.load %arg2[%c0_10, %c0_11] : memref<16x128xbf16, #tpu.memory_space<vmem>>, vector<16x128xbf16>
      %c0_12 = arith.constant 0 : index
      %c0_13 = arith.constant 0 : index
      %21 = vector.load %arg3[%c0_12, %c0_13] : memref<128x128xbf16, #tpu.memory_space<vmem>>, vector<128x128xbf16>
      %cst_14 = arith.constant dense<0.000000e+00> : vector<16x128xf32>
      %22 = tpu.matmul %20, %21, %cst_14 {dimension_numbers = #tpu.dot_dimension_numbers<[1], [0], [0], [1], [0, 0, 1, 1], [], []>} : vector<16x128xbf16>, vector<128x128xbf16>, vector<16x128xf32> -> vector<16x128xf32>
      %c0_15 = arith.constant 0 : index
      %c0_16 = arith.constant 0 : index
      %23 = vector.load %arg4[%c0_15, %c0_16] : memref<1x128xf32, #tpu.memory_space<vmem>>, vector<1x128xf32>
      %24 = vector.broadcast %23 : vector<1x128xf32> to vector<16x128xf32>
      %25 = arith.addf %22, %24 : vector<16x128xf32>
      %cst_17 = arith.constant 0.000000e+00 : f32
      %26 = vector.broadcast %cst_17 : f32 to vector<16x128xf32>
      %27 = arith.maximumf %25, %26 : vector<16x128xf32>
      %28 = arith.truncf %27 : vector<16x128xf32> to vector<16x128xbf16>
      %c0_18 = arith.constant 0 : index
      %c0_19 = arith.constant 0 : index
      %29 = vector.load %arg10[%c0_18, %c0_19] : memref<16x128xbf16, #tpu.memory_space<vmem>>, vector<16x128xbf16>
      tpu.vector_store %arg10[%c0_18, %c0_19], %28 {strides = array<i32>} : memref<16x128xbf16, #tpu.memory_space<vmem>>, vector<16x128xbf16>,
    } else {
    }
    %c0 = arith.constant 0 : index
    %c0_1 = arith.constant 0 : index
    %3 = vector.load %arg10[%c0, %c0_1] : memref<16x128xbf16, #tpu.memory_space<vmem>>, vector<16x128xbf16>
    %4 = arith.index_cast %arg1 : i32 to index
    %c0_2 = arith.constant 0 : index
    %c0_3 = arith.constant 0 : index
    %5 = vector.load %arg5[%4, %c0_2, %c0_3] : memref<2x128x128xbf16, #tpu.memory_space<vmem>>, vector<1x128x128xbf16>
    %6 = vector.shape_cast %5 : vector<1x128x128xbf16> to vector<128x128xbf16>
    %cst = arith.constant dense<0.000000e+00> : vector<16x128xf32>
    %7 = tpu.matmul %3, %6, %cst {dimension_numbers = #tpu.dot_dimension_numbers<[1], [0], [0], [1], [0, 0, 1, 1], [], []>} : vector<16x128xbf16>, vector<128x128xbf16>, vector<16x128xf32> -> vector<16x128xf32>
    %8 = arith.index_cast %arg1 : i32 to index
    %c0_4 = arith.constant 0 : index
    %c0_5 = arith.constant 0 : index
    %9 = vector.load %arg6[%8, %c0_4, %c0_5] : memref<2x1x128xf32, #tpu.memory_space<vmem>>, vector<1x1x128xf32>
    %10 = vector.shape_cast %9 : vector<1x1x128xf32> to vector<1x128xf32>
    %11 = vector.broadcast %10 : vector<1x128xf32> to vector<16x128xf32>
    %12 = arith.addf %7, %11 : vector<16x128xf32>
    %cst_6 = arith.constant 0.000000e+00 : f32
    %13 = vector.broadcast %cst_6 : f32 to vector<16x128xf32>
    %14 = arith.maximumf %12, %13 : vector<16x128xf32>
    %15 = arith.truncf %14 : vector<16x128xf32> to vector<16x128xbf16>
    %c0_7 = arith.constant 0 : index
    %c0_8 = arith.constant 0 : index
    %16 = vector.load %arg10[%c0_7, %c0_8] : memref<16x128xbf16, #tpu.memory_space<vmem>>, vector<16x128xbf16>
    tpu.vector_store %arg10[%c0_7, %c0_8], %15 {strides = array<i32>} : memref<16x128xbf16, #tpu.memory_space<vmem>>, vector<16x128xbf16>,
    %c1_i32 = arith.constant 1 : i32
    %17 = arith.cmpi eq, %arg1, %c1_i32 : i32
    %18 = arith.extui %17 : i1 to i32
    %c0_i32_9 = arith.constant 0 : i32
    %19 = arith.cmpi ne, %18, %c0_i32_9 : i32
    scf.if %19 {
      %c0_10 = arith.constant 0 : index
      %c0_11 = arith.constant 0 : index
      %20 = vector.load %arg10[%c0_10, %c0_11] : memref<16x128xbf16, #tpu.memory_space<vmem>>, vector<16x128xbf16>
      %c0_12 = arith.constant 0 : index
      %c0_13 = arith.constant 0 : index
      %21 = vector.load %arg7[%c0_12, %c0_13] : memref<128x128xbf16, #tpu.memory_space<vmem>>, vector<128x128xbf16>
      %cst_14 = arith.constant dense<0.000000e+00> : vector<16x128xf32>
      %22 = tpu.matmul %20, %21, %cst_14 {dimension_numbers = #tpu.dot_dimension_numbers<[1], [0], [0], [1], [0, 0, 1, 1], [], []>} : vector<16x128xbf16>, vector<128x128xbf16>, vector<16x128xf32> -> vector<16x128xf32>
      %c0_15 = arith.constant 0 : index
      %c0_16 = arith.constant 0 : index
      %23 = vector.load %arg8[%c0_15, %c0_16] : memref<1x128xf32, #tpu.memory_space<vmem>>, vector<1x128xf32>
      %24 = vector.broadcast %23 : vector<1x128xf32> to vector<16x128xf32>
      %25 = arith.addf %22, %24 : vector<16x128xf32>
      %c0_17 = arith.constant 0 : index
      %c0_18 = arith.constant 0 : index
      %26 = vector.load %arg9[%c0_17, %c0_18] : memref<16x128xf32, #tpu.memory_space<vmem>>, vector<16x128xf32>
      tpu.vector_store %arg9[%c0_17, %c0_18], %25 {strides = array<i32>} : memref<16x128xf32, #tpu.memory_space<vmem>>, vector<16x128xf32>,
    } else {
    }
    return
  }
  func.func @transform_0(%arg0: i32, %arg1: i32) -> (i32, i32) {
    %c0_i32 = arith.constant 0 : i32
    %c0_i32_0 = arith.constant 0 : i32
    return %arg0, %c0_i32 : i32, i32
  }
  func.func @transform_1(%arg0: i32, %arg1: i32) -> (i32, i32) {
    %c0_i32 = arith.constant 0 : i32
    %c0_i32_0 = arith.constant 0 : i32
    %c0_i32_1 = arith.constant 0 : i32
    return %c0_i32, %c0_i32_0 : i32, i32
  }
  func.func @transform_2(%arg0: i32, %arg1: i32) -> (i32, i32) {
    %c0_i32 = arith.constant 0 : i32
    %c0_i32_0 = arith.constant 0 : i32
    %c0_i32_1 = arith.constant 0 : i32
    return %c0_i32, %c0_i32_0 : i32, i32
  }
  func.func @transform_3(%arg0: i32, %arg1: i32) -> (i32, i32, i32) {
    %c0_i32 = arith.constant 0 : i32
    %c0_i32_0 = arith.constant 0 : i32
    %c0_i32_1 = arith.constant 0 : i32
    %c0_i32_2 = arith.constant 0 : i32
    return %c0_i32, %c0_i32_0, %c0_i32_1 : i32, i32, i32
  }
  func.func @transform_4(%arg0: i32, %arg1: i32) -> (i32, i32, i32) {
    %c0_i32 = arith.constant 0 : i32
    %c0_i32_0 = arith.constant 0 : i32
    %c0_i32_1 = arith.constant 0 : i32
    %c0_i32_2 = arith.constant 0 : i32
    return %c0_i32, %c0_i32_0, %c0_i32_1 : i32, i32, i32
  }
  func.func @transform_5(%arg0: i32, %arg1: i32) -> (i32, i32) {
    %c0_i32 = arith.constant 0 : i32
    %c0_i32_0 = arith.constant 0 : i32
    %c0_i32_1 = arith.constant 0 : i32
    return %c0_i32, %c0_i32_0 : i32, i32
  }
  func.func @transform_6(%arg0: i32, %arg1: i32) -> (i32, i32) {
    %c0_i32 = arith.constant 0 : i32
    %c0_i32_0 = arith.constant 0 : i32
    %c0_i32_1 = arith.constant 0 : i32
    return %c0_i32, %c0_i32_0 : i32, i32
  }
  func.func @transform_7(%arg0: i32, %arg1: i32) -> (i32, i32) {
    %c0_i32 = arith.constant 0 : i32
    %c0_i32_0 = arith.constant 0 : i32
    return %arg0, %c0_i32 : i32, i32
  }
}

</mosaic_0001>

<llo_original>
// kernel: tpu_custom_call.1
$region0: #{tpu_custom_call.1}
  #allocation0 [shape = 'u32[]', space=smem, size = 0x4, offset = 0x4, fixed_abs, tag = 'smem constant byte address 0x4 - core index']
  #allocation1 [shape = 'u32[144,128]{1,0:T(1,128)}', space=vmem, size = 0x12000, scoped, tag = 'internal scratch']
  #allocation2 [shape = 'bf16[16,128]{1,0:T(16,128)(2,1)}', space=vmem, size = 0x1000, scoped, tag = 'scratch operand']
  %s0 = inlined_call_operand.hbm [shape: bf16[16,128], index: 0, kind: input, shape index: {}]
  %s1 = inlined_call_operand.hbm [shape: bf16[128,128], index: 1, kind: input, shape index: {}]
  %s2 = inlined_call_operand.vmem [shape: f32[1,128], index: 2, kind: input, shape index: {}]
  %s3 = inlined_call_operand.hbm [shape: bf16[2,128,128], index: 3, kind: input, shape index: {}]
  %s4 = inlined_call_operand.vmem [shape: f32[2,1,128], index: 4, kind: input, shape index: {}]
  %s5 = inlined_call_operand.hbm [shape: bf16[128,128], index: 5, kind: input, shape index: {}]
  %s6 = inlined_call_operand.vmem [shape: f32[1,128], index: 6, kind: input, shape index: {}]
  %s7 = inlined_call_operand.hbm [shape: f32[16,128], index: 7, kind: output, shape index: {}]
  %s8 = sld [smem:[#allocation0]]
  $region85: #{tpu_custom_call.1} parent=0
    _
  %s10 = ssub.s32 1, %s8
  %s11 = scalar_select 0, %s10, %s8
  $region1: #{tpu_custom_call.1} parent=0
    #allocation3 [shape = 'u8[4096]{0}', space=vmem, size = 0x1000, scoped, tag = 'input window, operand 0, single buffered']
    #allocation4 [shape = 's32[2]{0}', space=sflag, size = 0x8, scoped, tag = 'scoped memory for tpu_custom_call.1']
    #allocation5 [shape = 's32[2]{0}', space=sflag, size = 0x8, scoped, tag = 'scoped memory for tpu_custom_call.1']
    #allocation6 [shape = 'u8[32768]{0}', space=vmem, size = 0x8000, scoped, tag = 'input window, operand 1, single buffered']
    #allocation7 [shape = 's32[1]{0}', space=sflag, size = 0x4, scoped, tag = 'scoped memory for tpu_custom_call.1']
    #allocation8 [shape = 'u8[65536]{0}', space=vmem, size = 0x10000, scoped, tag = 'input window, operand 3, single buffered']
    #allocation9 [shape = 'u8[32768]{0}', space=vmem, size = 0x8000, scoped, tag = 'input window, operand 5, single buffered']
    #allocation10 [shape = 's32[1]{0}', space=sflag, size = 0x4, scoped, tag = 'scoped memory for tpu_custom_call.1']
    #allocation11 [shape = 'u8[8192]{0}', space=vmem, size = 0x2000, scoped, tag = 'output window, operand 0, single buffered']
    %12 = vsyncpa [#allocation4], 0
    %13 = vsyncpa [#allocation7], 0
    %14 = vsyncpa [#allocation10], 0
    %15 = vsyncpa [#allocation5], 0
    loop: start=0, step=1, limit=4
    $region2: #{tpu_custom_call.1} parent=1 // loop_pre_header
      _
    $region3: #{tpu_custom_call.1} parent=1 // loop_header
      %s17 = sphi 0, %s21
      %p18 = scmp.ge.s32.totalorder %s17, 4
      %s24 = sphi 0, %s36
      %s25 = sphi 0, %s32
      %s26 = sphi 0, %s24
      %s27 = sphi 0, %s25
      %s28 = sphi 0, %s26
      %s29 = sphi 0, %s27
      %s39 = sphi 0, %s41
      %s42 = sphi 0, %s39
      %s43 = sphi 0, %s42
      %s59 = sphi 0, %s43
      %s63 = sphi 0, %s63
      %s65 = sphi 0, %s63
      %s66 = sphi 0, %s65
      %s80 = sphi 0, %s66
      %s84 = sphi 0, %s84
      %s86 = sphi 0, %s84
      %s87 = sphi 0, %s86
      %s101 = sphi 0, %s87
      %s105 = sphi 0, %s105
      %s107 = sphi 0, %s105
      %s108 = sphi 0, %s107
      %s122 = sphi 0, %s108
      %s126 = sphi 0, %s126
      %s128 = sphi 0, %s126
      %s129 = sphi 0, %s128
      %s143 = sphi 0, %s129
      %s147 = sphi 0, %s147
      %s149 = sphi 0, %s147
      %s150 = sphi 0, %s149
      %s164 = sphi 0, %s150
      %s168 = sphi 0, %s168
      %s170 = sphi 0, %s168
      %s171 = sphi 0, %s170
      %s185 = sphi 0, %s171
      %s191 = sphi 0, %s193
      %s194 = sphi 0, %s191
      %s195 = sphi 0, %s194
      %s211 = sphi 0, %s195
    $region4: #{tpu_custom_call.1} parent=1 // loop_header_branch
      %20 = sbr.rel (%p18) target = $region8
    $region5: #{tpu_custom_call.1} parent=1 // loop_body
      %s22 = ssub.s32 %s17, 1
      %s23 = ssub.s32 %s17, 2
      %s30 = sadd.s32 1, %s25
      %p31 = scmp.ge.s32.totalorder %s30, 2
      %s32 = scalar_select %p31, 0, %s30
      %s33 = sadd.s32 1, %s24
      %s34 = scalar_select %p31, %s33, %s24
      %p35 = scmp.ge.s32.totalorder %s34, 1
      %s36 = scalar_select %p35, 0, %s34
      %s37 = ssub.s32 %s24, %s36
      %p38 = scmp.eq.s32.totalorder %s37, 0
      %s40 = sadd.s32 %s39, 1
      %s41 = scalar_select %p38, %s39, %s40
      %p44 = pneg %p38
      %p45 = scmp.eq.s32.totalorder %s17, 1
      %p46 = por %p44, %p45
      %p47 = scmp.ne.s32.totalorder %s39, %s42
      %p48 = scmp.eq.s32.totalorder %s17, 0
      %p49 = por %p47, %p48
      %p50 = scmp.ne.s32.totalorder %s39, %s42
      %p51 = scmp.eq.s32.totalorder %s22, 1
      %p52 = por %p50, %p51
      %p53 = scmp.ne.s32.totalorder %s42, %s43
      %p54 = scmp.eq.s32.totalorder %s22, 0
      %p55 = por %p53, %p54
      %p56 = scmp.ne.s32.totalorder %s42, %s43
      %p57 = scmp.eq.s32.totalorder %s23, 1
      %p58 = por %p56, %p57
      %p60 = scmp.ne.s32.totalorder %s43, %s59
      %p61 = scmp.eq.s32.totalorder %s23, 0
      %p62 = por %p60, %p61
      %s64 = sadd.s32 %s63, 1
      %p67 = scmp.eq.s32.totalorder %s17, 1
      %p68 = scmp.ne.s32.totalorder %s63, %s65
      %p69 = scmp.eq.s32.totalorder %s17, 0
      %p70 = por %p68, %p69
      %p71 = scmp.ne.s32.totalorder %s63, %s65
      %p72 = scmp.eq.s32.totalorder %s22, 1
      %p73 = por %p71, %p72
      %p74 = scmp.ne.s32.totalorder %s65, %s66
      %p75 = scmp.eq.s32.totalorder %s22, 0
      %p76 = por %p74, %p75
      %p77 = scmp.ne.s32.totalorder %s65, %s66
      %p78 = scmp.eq.s32.totalorder %s23, 1
      %p79 = por %p77, %p78
      %p81 = scmp.ne.s32.totalorder %s66, %s80
      %p82 = scmp.eq.s32.totalorder %s23, 0
      %p83 = por %p81, %p82
      %s85 = sadd.s32 %s84, 1
      %p88 = scmp.eq.s32.totalorder %s17, 1
      %p89 = scmp.ne.s32.totalorder %s84, %s86
      %p90 = scmp.eq.s32.totalorder %s17, 0
      %p91 = por %p89, %p90
      %p92 = scmp.ne.s32.totalorder %s84, %s86
      %p93 = scmp.eq.s32.totalorder %s22, 1
      %p94 = por %p92, %p93
      %p95 = scmp.ne.s32.totalorder %s86, %s87
      %p96 = scmp.eq.s32.totalorder %s22, 0
      %p97 = por %p95, %p96
      %p98 = scmp.ne.s32.totalorder %s86, %s87
      %p99 = scmp.eq.s32.totalorder %s23, 1
      %p100 = por %p98, %p99
      %p102 = scmp.ne.s32.totalorder %s87, %s101
      %p103 = scmp.eq.s32.totalorder %s23, 0
      %p104 = por %p102, %p103
      %s106 = sadd.s32 %s105, 1
      %p109 = scmp.eq.s32.totalorder %s17, 1
      %p110 = scmp.ne.s32.totalorder %s105, %s107
      %p111 = scmp.eq.s32.totalorder %s17, 0
      %p112 = por %p110, %p111
      %p113 = scmp.ne.s32.totalorder %s105, %s107
      %p114 = scmp.eq.s32.totalorder %s22, 1
      %p115 = por %p113, %p114
      %p116 = scmp.ne.s32.totalorder %s107, %s108
      %p117 = scmp.eq.s32.totalorder %s22, 0
      %p118 = por %p116, %p117
      %p119 = scmp.ne.s32.totalorder %s107, %s108
      %p120 = scmp.eq.s32.totalorder %s23, 1
      %p121 = por %p119, %p120
      %p123 = scmp.ne.s32.totalorder %s108, %s122
      %p124 = scmp.eq.s32.totalorder %s23, 0
      %p125 = por %p123, %p124
      %s127 = sadd.s32 %s126, 1
      %p130 = scmp.eq.s32.totalorder %s17, 1
      %p131 = scmp.ne.s32.totalorder %s126, %s128
      %p132 = scmp.eq.s32.totalorder %s17, 0
      %p133 = por %p131, %p132
      %p134 = scmp.ne.s32.totalorder %s126, %s128
      %p135 = scmp.eq.s32.totalorder %s22, 1
      %p136 = por %p134, %p135
      %p137 = scmp.ne.s32.totalorder %s128, %s129
      %p138 = scmp.eq.s32.totalorder %s22, 0
      %p139 = por %p137, %p138
      %p140 = scmp.ne.s32.totalorder %s128, %s129
      %p141 = scmp.eq.s32.totalorder %s23, 1
      %p142 = por %p140, %p141
      %p144 = scmp.ne.s32.totalorder %s129, %s143
      %p145 = scmp.eq.s32.totalorder %s23, 0
      %p146 = por %p144, %p145
      %s148 = sadd.s32 %s147, 1
      %p151 = scmp.eq.s32.totalorder %s17, 1
      %p152 = scmp.ne.s32.totalorder %s147, %s149
      %p153 = scmp.eq.s32.totalorder %s17, 0
      %p154 = por %p152, %p153
      %p155 = scmp.ne.s32.totalorder %s147, %s149
      %p156 = scmp.eq.s32.totalorder %s22, 1
      %p157 = por %p155, %p156
      %p158 = scmp.ne.s32.totalorder %s149, %s150
      %p159 = scmp.eq.s32.totalorder %s22, 0
      %p160 = por %p158, %p159
      %p161 = scmp.ne.s32.totalorder %s149, %s150
      %p162 = scmp.eq.s32.totalorder %s23, 1
      %p163 = por %p161, %p162
      %p165 = scmp.ne.s32.totalorder %s150, %s164
      %p166 = scmp.eq.s32.totalorder %s23, 0
      %p167 = por %p165, %p166
      %s169 = sadd.s32 %s168, 1
      %p172 = scmp.eq.s32.totalorder %s17, 1
      %p173 = scmp.ne.s32.totalorder %s168, %s170
      %p174 = scmp.eq.s32.totalorder %s17, 0
      %p175 = por %p173, %p174
      %p176 = scmp.ne.s32.totalorder %s168, %s170
      %p177 = scmp.eq.s32.totalorder %s22, 1
      %p178 = por %p176, %p177
      %p179 = scmp.ne.s32.totalorder %s170, %s171
      %p180 = scmp.eq.s32.totalorder %s22, 0
      %p181 = por %p179, %p180
      %p182 = scmp.ne.s32.totalorder %s170, %s171
      %p183 = scmp.eq.s32.totalorder %s23, 1
      %p184 = por %p182, %p183
      %p186 = scmp.ne.s32.totalorder %s171, %s185
      %p187 = scmp.eq.s32.totalorder %s23, 0
      %p188 = por %p186, %p187
      %s189 = ssub.s32 %s24, %s36
      %p190 = scmp.eq.s32.totalorder %s189, 0
      %s192 = sadd.s32 %s191, 1
      %s193 = scalar_select %p190, %s191, %s192
      %p196 = pneg %p190
      %p197 = scmp.eq.s32.totalorder %s17, 1
      %p198 = por %p196, %p197
      %p199 = scmp.ne.s32.totalorder %s191, %s194
      %p200 = scmp.eq.s32.totalorder %s17, 0
      %p201 = por %p199, %p200
      %p202 = scmp.ne.s32.totalorder %s191, %s194
      %p203 = scmp.eq.s32.totalorder %s22, 1
      %p204 = por %p202, %p203
      %p205 = scmp.ne.s32.totalorder %s194, %s195
      %p206 = scmp.eq.s32.totalorder %s22, 0
      %p207 = por %p205, %p206
      %p208 = scmp.ne.s32.totalorder %s194, %s195
      %p209 = scmp.eq.s32.totalorder %s23, 1
      %p210 = por %p208, %p209
      %p212 = scmp.ne.s32.totalorder %s195, %s211
      %p213 = scmp.eq.s32.totalorder %s23, 0
      %p214 = por %p212, %p213
      %p215 = scmp.le.s32.totalorder 1, %s17
      %p216 = scmp.lt.s32.totalorder %s17, 3
      %p217 = pnand %p215, %p216
      %p218 = pneg %p217
      // Predicated region
      $region9: #{tpu_custom_call.1} parent=5 // pred_check
        _
      $region10: #{tpu_custom_call.1} parent=5 // pred_check_branch
        %220 = sbr.rel (%p217) target = $region12
      $region11: #{tpu_custom_call.1} parent=5 // pred_region
        %s221 = ssub.s32 %s17, 1
        // Predicated region
        $region13: #{tpu_custom_call.1} parent=11 // pred_check
          %p222 = pneg %p55
        $region14: #{tpu_custom_call.1} parent=11 // pred_check_branch
          %224 = sbr.rel (%p222) target = $region16
        $region15: #{tpu_custom_call.1} parent=11 // pred_region
          %s225 = smul.u32 2, %s26
          %s227 = ssub.s32 128, 128
          %228 = vsyncadd [#allocation4], %s227
          %s229 = smul.addr %s225, 64
          %s230 = scalar_lea.hbm %s0, %s229
          %s231 = sshll.u32 [#allocation3], 4
          %s232 = int_to_ptr.vmem [resolvable:$true] %s231
          %237 = dma.hbm_to_vmem [thread:$0]  %s230, 128, %s232, [#allocation4], 64, 64, 4
        $region16: #{tpu_custom_call.1} parent=11 // pred_fallthru
          _
        // Predicated region
        $region17: #{tpu_custom_call.1} parent=11 // pred_check
          %p238 = pneg %p76
        $region18: #{tpu_custom_call.1} parent=11 // pred_check_branch
          %240 = sbr.rel (%p238) target = $region20
        $region19: #{tpu_custom_call.1} parent=11 // pred_region
          %s242 = ssub.s32 1024, 1024
          %243 = vsyncadd [#allocation7], %s242
          %s244 = sshll.u32 [#allocation6], 4
          %s245 = int_to_ptr.vmem [resolvable:$true] %s244
          %250 = dma.hbm_to_vmem [thread:$0]  %s1, 1024, %s245, [#allocation7], 64, 64, 4
        $region20: #{tpu_custom_call.1} parent=11 // pred_fallthru
          _
        // Predicated region
        $region21: #{tpu_custom_call.1} parent=11 // pred_check
          %p251 = pneg %p97
        $region22: #{tpu_custom_call.1} parent=11 // pred_check_branch
          %253 = sbr.rel (%p251) target = $region24
        $region23: #{tpu_custom_call.1} parent=11 // pred_region
          _
        $region24: #{tpu_custom_call.1} parent=11 // pred_fallthru
          _
        // Predicated region
        $region25: #{tpu_custom_call.1} parent=11 // pred_check
          %p254 = pneg %p118
        $region26: #{tpu_custom_call.1} parent=11 // pred_check_branch
          %256 = sbr.rel (%p254) target = $region28
        $region27: #{tpu_custom_call.1} parent=11 // pred_region
          %s258 = ssub.s32 2048, 2048
          %259 = vsyncadd [#allocation7], %s258
          %s260 = sshll.u32 [#allocation8], 4
          %s261 = int_to_ptr.vmem [resolvable:$true] %s260
          %266 = dma.hbm_to_vmem [thread:$0]  %s3, 2048, %s261, [#allocation7], 64, 64, 4
        $region28: #{tpu_custom_call.1} parent=11 // pred_fallthru
          _
        // Predicated region
        $region29: #{tpu_custom_call.1} parent=11 // pred_check
          %p267 = pneg %p139
        $region30: #{tpu_custom_call.1} parent=11 // pred_check_branch
          %269 = sbr.rel (%p267) target = $region32
        $region31: #{tpu_custom_call.1} parent=11 // pred_region
          _
        $region32: #{tpu_custom_call.1} parent=11 // pred_fallthru
          _
        // Predicated region
        $region33: #{tpu_custom_call.1} parent=11 // pred_check
          %p270 = pneg %p160
        $region34: #{tpu_custom_call.1} parent=11 // pred_check_branch
          %272 = sbr.rel (%p270) target = $region36
        $region35: #{tpu_custom_call.1} parent=11 // pred_region
          %s274 = ssub.s32 1024, 1024
          %275 = vsyncadd [#allocation10], %s274
          %s276 = sshll.u32 [#allocation9], 4
          %s277 = int_to_ptr.vmem [resolvable:$true] %s276
          %282 = dma.hbm_to_vmem [thread:$0]  %s5, 1024, %s277, [#allocation10], 64, 64, 4
        $region36: #{tpu_custom_call.1} parent=11 // pred_fallthru
          _
        // Predicated region
        $region37: #{tpu_custom_call.1} parent=11 // pred_check
          %p283 = pneg %p181
        $region38: #{tpu_custom_call.1} parent=11 // pred_check_branch
          %285 = sbr.rel (%p283) target = $region40
        $region39: #{tpu_custom_call.1} parent=11 // pred_region
          _
        $region40: #{tpu_custom_call.1} parent=11 // pred_fallthru
          _
      $region12: #{tpu_custom_call.1} parent=5 // pred_fallthru
        _
      %p286 = scmp.lt.s32.totalorder %s17, 2
      // Predicated region
      $region41: #{tpu_custom_call.1} parent=5 // pred_check
        %p287 = pneg %p286
      $region42: #{tpu_custom_call.1} parent=5 // pred_check_branch
        %289 = sbr.rel (%p287) target = $region44
      $region43: #{tpu_custom_call.1} parent=5 // pred_region
        _
      $region44: #{tpu_custom_call.1} parent=5 // pred_fallthru
        _
      %p290 = scmp.le.s32.totalorder 1, %s17
      %p291 = scmp.lt.s32.totalorder %s17, 3
      %p292 = pnand %p290, %p291
      %p293 = pneg %p292
      // Predicated region
      $region45: #{tpu_custom_call.1} parent=5 // pred_check
        _
      $region46: #{tpu_custom_call.1} parent=5 // pred_check_branch
        %295 = sbr.rel (%p292) target = $region48
      $region47: #{tpu_custom_call.1} parent=5 // pred_region
        %s296 = ssub.s32 %s17, 1
        // Predicated region
        $region49: #{tpu_custom_call.1} parent=47 // pred_check
          %p297 = pneg %p55
        $region50: #{tpu_custom_call.1} parent=47 // pred_check_branch
          %299 = sbr.rel (%p297) target = $region52
        $region51: #{tpu_custom_call.1} parent=47 // pred_region
          %300 = dma.done [#allocation4], 128
        $region52: #{tpu_custom_call.1} parent=47 // pred_fallthru
          _
        // Predicated region
        $region53: #{tpu_custom_call.1} parent=47 // pred_check
          %p301 = pneg %p76
        $region54: #{tpu_custom_call.1} parent=47 // pred_check_branch
          %303 = sbr.rel (%p301) target = $region56
        $region55: #{tpu_custom_call.1} parent=47 // pred_region
          %304 = dma.done [#allocation7], 1024
        $region56: #{tpu_custom_call.1} parent=47 // pred_fallthru
          _
        // Predicated region
        $region57: #{tpu_custom_call.1} parent=47 // pred_check
          %p305 = pneg %p118
        $region58: #{tpu_custom_call.1} parent=47 // pred_check_branch
          %307 = sbr.rel (%p305) target = $region60
        $region59: #{tpu_custom_call.1} parent=47 // pred_region
          %308 = dma.done [#allocation7], 2048
        $region60: #{tpu_custom_call.1} parent=47 // pred_fallthru
          _
        // Predicated region
        $region61: #{tpu_custom_call.1} parent=47 // pred_check
          %p309 = pneg %p160
        $region62: #{tpu_custom_call.1} parent=47 // pred_check_branch
          %311 = sbr.rel (%p309) target = $region64
        $region63: #{tpu_custom_call.1} parent=47 // pred_region
          %312 = dma.done [#allocation10], 1024
        $region64: #{tpu_custom_call.1} parent=47 // pred_fallthru
          _
        %p313 = pneg %p55
        %p314 = pneg %p52
        %p315 = pneg %p76
        %p316 = pneg %p73
        %p317 = pneg %p97
        %p318 = pneg %p94
        %p319 = pneg %p118
        %p320 = pneg %p115
        %p321 = pneg %p139
        %p322 = pneg %p136
        %p323 = pneg %p160
        %p324 = pneg %p157
        %p325 = pneg %p181
        %p326 = pneg %p178
        %p327 = pneg %p207
        %p328 = pneg %p204
        %s329 = smul.u32 2, %s26
        %s330 = smul.u32 2, %s26
        %p332 = scmp.eq.s32.totalorder %s27, 0
        // Predicated region
        $region65: #{tpu_custom_call.1} parent=47 // pred_check
          %p333 = pneg %p332
        $region66: #{tpu_custom_call.1} parent=47 // pred_check_branch
          %335 = sbr.rel (%p333) target = $region68
        $region67: #{tpu_custom_call.1} parent=47 // pred_region
          %v336 = vld [vmem:[#allocation3] sm:$0xf]
          %v337 = vld [vmem:[#allocation3 + $0x4] sm:$0xf]
          %v338 = vld [vmem:[#allocation6] sm:$0xf]
          %v339 = vld [vmem:[#allocation6 + $0x4] sm:$0xf]
          %v340 = vld [vmem:[#allocation6 + $0x8] sm:$0xf]
          %v341 = vld [vmem:[#allocation6 + $0xc] sm:$0xf]
          %v342 = vld [vmem:[#allocation6 + $0x10] sm:$0xf]
          %v343 = vld [vmem:[#allocation6 + $0x14] sm:$0xf]
          %v344 = vld [vmem:[#allocation6 + $0x18] sm:$0xf]
          %v345 = vld [vmem:[#allocation6 + $0x1c] sm:$0xf]
          %v346 = vld [vmem:[#allocation6 + $0x20] sm:$0xf]
          %v347 = vld [vmem:[#allocation6 + $0x24] sm:$0xf]
          %v348 = vld [vmem:[#allocation6 + $0x28] sm:$0xf]
          %v349 = vld [vmem:[#allocation6 + $0x2c] sm:$0xf]
          %v350 = vld [vmem:[#allocation6 + $0x30] sm:$0xf]
          %v351 = vld [vmem:[#allocation6 + $0x34] sm:$0xf]
          %v352 = vld [vmem:[#allocation6 + $0x38] sm:$0xf]
          %v353 = vld [vmem:[#allocation6 + $0x3c] sm:$0xf]
          %v354 = vld [vmem:[%s2] sm:$0x1]
          %v356 = vlaneseq
          %v357 = vshrl.u32 %v356, 7
          %v358 = vsub.s32 0, %v357
          %v359 = vrot.slane %v354, %v358
          %v363 = vunpack.c.l.b16 %v336
          %v364 = vunpack.c.l.b16 %v337
          %v365 = vpack.c.b16 %v364, %v363
          %v383 = vunpack.c.l.b16 %v338
          %v384 = vunpack.c.l.b16 %v339
          %v385 = vunpack.c.l.b16 %v340
          %v386 = vunpack.c.l.b16 %v341
          %v387 = vunpack.c.l.b16 %v342
          %v388 = vunpack.c.l.b16 %v343
          %v389 = vunpack.c.l.b16 %v344
          %v390 = vunpack.c.l.b16 %v345
          %v391 = vunpack.c.l.b16 %v346
          %v392 = vunpack.c.l.b16 %v347
          %v393 = vunpack.c.l.b16 %v348
          %v394 = vunpack.c.l.b16 %v349
          %v395 = vunpack.c.l.b16 %v350
          %v396 = vunpack.c.l.b16 %v351
          %v397 = vunpack.c.l.b16 %v352
          %v398 = vunpack.c.l.b16 %v353
          %v399 = vpack.c.b16 %v384, %v383
          %v400 = vpack.c.b16 %v386, %v385
          %v401 = vpack.c.b16 %v388, %v387
          %v402 = vpack.c.b16 %v390, %v389
          %v403 = vpack.c.b16 %v392, %v391
          %v404 = vpack.c.b16 %v394, %v393
          %v405 = vpack.c.b16 %v396, %v395
          %v406 = vpack.c.b16 %v398, %v397
          %415 = vmatprep.subr.bf16.mxu0 0
          %416 = vmatpush1.bf16.msra.mxu0 %v399
          %417 = vmatprep.subr.bf16.mxu0 0
          %418 = vmatpush1.bf16.msra.mxu0 %v400
          %419 = vmatprep.subr.bf16.mxu0 0
          %420 = vmatpush1.bf16.msra.mxu0 %v401
          %421 = vmatprep.subr.bf16.mxu0 0
          %422 = vmatpush1.bf16.msra.mxu0 %v402
          %423 = vmatprep.subr.bf16.mxu0 0
          %424 = vmatpush1.bf16.msra.mxu0 %v403
          %425 = vmatprep.subr.bf16.mxu0 0
          %426 = vmatpush1.bf16.msra.mxu0 %v404
          %427 = vmatprep.subr.bf16.mxu0 0
          %428 = vmatpush1.bf16.msra.mxu0 %v405
          %429 = vmatprep.subr.bf16.mxu0 0
          %430 = vmatpush1.bf16.msra.mxu0 %v406
          %431 = vmatprep.subr.bf16.mxu0 0
          %432 = vmatpush1.bf16.msra.mxu0 0
          %433 = vmatprep.subr.bf16.mxu0 0
          %434 = vmatpush1.bf16.msra.mxu0 0
          %435 = vmatprep.subr.bf16.mxu0 0
          %436 = vmatpush1.bf16.msra.mxu0 0
          %437 = vmatprep.subr.bf16.mxu0 0
          %438 = vmatpush1.bf16.msra.mxu0 0
          %439 = vmatprep.subr.bf16.mxu0 0
          %440 = vmatpush1.bf16.msra.mxu0 0
          %441 = vmatprep.subr.bf16.mxu0 0
          %442 = vmatpush1.bf16.msra.mxu0 0
          %443 = vmatprep.subr.bf16.mxu0 0
          %444 = vmatpush1.bf16.msra.mxu0 0
          %445 = vmatprep.subr.bf16.mxu0 0
          %446 = vmatpush1.bf16.msra.mxu0 0
          %447 = vmatprep.mubr.bf16.mxu0 0
          %448 = vmatmul.mubr.bf16.gmra.mrb[0].mxu0 %v365
          %v449 = vpop.f32.mrb[0].mxu0
          %v450 = vadd.f32 %v359, %v449
          %v451 = vpop.f32.mrb[0].mxu0
          %v452 = vpop.f32.mrb[0].mxu0
          %v453 = vadd.f32 %v359, %v452
          %v454 = vpop.f32.mrb[0].mxu0
          %455 = vdwg.mxu0
          %v456 = vmax.f32 %v450, 0.0
          %v457 = vmax.f32 %v453, 0.0
          %v458 = vpack.c.bf16 %v457, %v456
          %459 = vst [vmem:[#allocation2] sm:$0xff] %v458
        $region68: #{tpu_custom_call.1} parent=47 // pred_fallthru
          _
        %v460 = vld [vmem:[#allocation2] sm:$0xff]
        %s461 = smul.u32 %s27, 16
        %s462 = smul.addr %s461, 4
        %s463 = scalar_lea.vmem [#allocation8], %s462
        %v464 = vld [vmem:[%s463] sm:$0xf]
        %v465 = vld [vmem:[%s463 + $0x4] sm:$0xf]
        %v466 = vld [vmem:[%s463 + $0x8] sm:$0xf]
        %v467 = vld [vmem:[%s463 + $0xc] sm:$0xf]
        %v468 = vld [vmem:[%s463 + $0x10] sm:$0xf]
        %v469 = vld [vmem:[%s463 + $0x14] sm:$0xf]
        %v470 = vld [vmem:[%s463 + $0x18] sm:$0xf]
        %v471 = vld [vmem:[%s463 + $0x1c] sm:$0xf]
        %v472 = vld [vmem:[%s463 + $0x20] sm:$0xf]
        %v473 = vld [vmem:[%s463 + $0x24] sm:$0xf]
        %v474 = vld [vmem:[%s463 + $0x28] sm:$0xf]
        %v475 = vld [vmem:[%s463 + $0x2c] sm:$0xf]
        %v476 = vld [vmem:[%s463 + $0x30] sm:$0xf]
        %v477 = vld [vmem:[%s463 + $0x34] sm:$0xf]
        %v478 = vld [vmem:[%s463 + $0x38] sm:$0xf]
        %v479 = vld [vmem:[%s463 + $0x3c] sm:$0xf]
        %s480 = scalar_lea.vmem %s4, %s27
        %v481 = vld [vmem:[%s480] sm:$0x1]
        %v483 = vlaneseq
        %v484 = vshrl.u32 %v483, 7
        %v485 = vsub.s32 0, %v484
        %v486 = vrot.slane %v481, %v485
        %v504 = vunpack.c.l.b16 %v464
        %v505 = vunpack.c.l.b16 %v465
        %v506 = vunpack.c.l.b16 %v466
        %v507 = vunpack.c.l.b16 %v467
        %v508 = vunpack.c.l.b16 %v468
        %v509 = vunpack.c.l.b16 %v469
        %v510 = vunpack.c.l.b16 %v470
        %v511 = vunpack.c.l.b16 %v471
        %v512 = vunpack.c.l.b16 %v472
        %v513 = vunpack.c.l.b16 %v473
        %v514 = vunpack.c.l.b16 %v474
        %v515 = vunpack.c.l.b16 %v475
        %v516 = vunpack.c.l.b16 %v476
        %v517 = vunpack.c.l.b16 %v477
        %v518 = vunpack.c.l.b16 %v478
        %v519 = vunpack.c.l.b16 %v479
        %v520 = vpack.c.b16 %v505, %v504
        %v521 = vpack.c.b16 %v507, %v506
        %v522 = vpack.c.b16 %v509, %v508
        %v523 = vpack.c.b16 %v511, %v510
        %v524 = vpack.c.b16 %v513, %v512
        %v525 = vpack.c.b16 %v515, %v514
        %v526 = vpack.c.b16 %v517, %v516
        %v527 = vpack.c.b16 %v519, %v518
        %536 = vmatprep.subr.bf16.mxu0 0
        %537 = vmatpush1.bf16.msra.mxu0 %v520
        %538 = vmatprep.subr.bf16.mxu0 0
        %539 = vmatpush1.bf16.msra.mxu0 %v521
        %540 = vmatprep.subr.bf16.mxu0 0
        %541 = vmatpush1.bf16.msra.mxu0 %v522
        %542 = vmatprep.subr.bf16.mxu0 0
        %543 = vmatpush1.bf16.msra.mxu0 %v523
        %544 = vmatprep.subr.bf16.mxu0 0
        %545 = vmatpush1.bf16.msra.mxu0 %v524
        %546 = vmatprep.subr.bf16.mxu0 0
        %547 = vmatpush1.bf16.msra.mxu0 %v525
        %548 = vmatprep.subr.bf16.mxu0 0
        %549 = vmatpush1.bf16.msra.mxu0 %v526
        %550 = vmatprep.subr.bf16.mxu0 0
        %551 = vmatpush1.bf16.msra.mxu0 %v527
        %552 = vmatprep.subr.bf16.mxu0 0
        %553 = vmatpush1.bf16.msra.mxu0 0
        %554 = vmatprep.subr.bf16.mxu0 0
        %555 = vmatpush1.bf16.msra.mxu0 0
        %556 = vmatprep.subr.bf16.mxu0 0
        %557 = vmatpush1.bf16.msra.mxu0 0
        %558 = vmatprep.subr.bf16.mxu0 0
        %559 = vmatpush1.bf16.msra.mxu0 0
        %560 = vmatprep.subr.bf16.mxu0 0
        %561 = vmatpush1.bf16.msra.mxu0 0
        %562 = vmatprep.subr.bf16.mxu0 0
        %563 = vmatpush1.bf16.msra.mxu0 0
        %564 = vmatprep.subr.bf16.mxu0 0
        %565 = vmatpush1.bf16.msra.mxu0 0
        %566 = vmatprep.subr.bf16.mxu0 0
        %567 = vmatpush1.bf16.msra.mxu0 0
        %568 = vmatprep.mubr.bf16.mxu0 0
        %569 = vmatmul.mubr.bf16.gmra.mrb[0].mxu0 %v460
        %v570 = vpop.f32.mrb[0].mxu0
        %v571 = vadd.f32 %v486, %v570
        %v572 = vpop.f32.mrb[0].mxu0
        %v573 = vpop.f32.mrb[0].mxu0
        %v574 = vadd.f32 %v486, %v573
        %v575 = vpop.f32.mrb[0].mxu0
        %576 = vdwg.mxu0
        %v577 = vmax.f32 %v571, 0.0
        %v578 = vmax.f32 %v574, 0.0
        %v579 = vpack.c.bf16 %v578, %v577
        %580 = vst [vmem:[#allocation2] sm:$0xff] %v579
        %p581 = scmp.eq.s32.totalorder %s27, 1
        // Predicated region
        $region69: #{tpu_custom_call.1} parent=47 // pred_check
          %p582 = pneg %p581
        $region70: #{tpu_custom_call.1} parent=47 // pred_check_branch
          %584 = sbr.rel (%p582) target = $region72
        $region71: #{tpu_custom_call.1} parent=47 // pred_region
          %v585 = vld [vmem:[#allocation2] sm:$0xff]
          %v586 = vld [vmem:[#allocation9] sm:$0xf]
          %v587 = vld [vmem:[#allocation9 + $0x4] sm:$0xf]
          %v588 = vld [vmem:[#allocation9 + $0x8] sm:$0xf]
          %v589 = vld [vmem:[#allocation9 + $0xc] sm:$0xf]
          %v590 = vld [vmem:[#allocation9 + $0x10] sm:$0xf]
          %v591 = vld [vmem:[#allocation9 + $0x14] sm:$0xf]
          %v592 = vld [vmem:[#allocation9 + $0x18] sm:$0xf]
          %v593 = vld [vmem:[#allocation9 + $0x1c] sm:$0xf]
          %v594 = vld [vmem:[#allocation9 + $0x20] sm:$0xf]
          %v595 = vld [vmem:[#allocation9 + $0x24] sm:$0xf]
          %v596 = vld [vmem:[#allocation9 + $0x28] sm:$0xf]
          %v597 = vld [vmem:[#allocation9 + $0x2c] sm:$0xf]
          %v598 = vld [vmem:[#allocation9 + $0x30] sm:$0xf]
          %v599 = vld [vmem:[#allocation9 + $0x34] sm:$0xf]
          %v600 = vld [vmem:[#allocation9 + $0x38] sm:$0xf]
          %v601 = vld [vmem:[#allocation9 + $0x3c] sm:$0xf]
          %v602 = vld [vmem:[%s6] sm:$0x1]
          %v604 = vlaneseq
          %v605 = vshrl.u32 %v604, 7
          %v606 = vsub.s32 0, %v605
          %v607 = vrot.slane %v602, %v606
          %v625 = vunpack.c.l.b16 %v586
          %v626 = vunpack.c.l.b16 %v587
          %v627 = vunpack.c.l.b16 %v588
          %v628 = vunpack.c.l.b16 %v589
          %v629 = vunpack.c.l.b16 %v590
          %v630 = vunpack.c.l.b16 %v591
          %v631 = vunpack.c.l.b16 %v592
          %v632 = vunpack.c.l.b16 %v593
          %v633 = vunpack.c.l.b16 %v594
          %v634 = vunpack.c.l.b16 %v595
          %v635 = vunpack.c.l.b16 %v596
          %v636 = vunpack.c.l.b16 %v597
          %v637 = vunpack.c.l.b16 %v598
          %v638 = vunpack.c.l.b16 %v599
          %v639 = vunpack.c.l.b16 %v600
          %v640 = vunpack.c.l.b16 %v601
          %v641 = vpack.c.b16 %v626, %v625
          %v642 = vpack.c.b16 %v628, %v627
          %v643 = vpack.c.b16 %v630, %v629
          %v644 = vpack.c.b16 %v632, %v631
          %v645 = vpack.c.b16 %v634, %v633
          %v646 = vpack.c.b16 %v636, %v635
          %v647 = vpack.c.b16 %v638, %v637
          %v648 = vpack.c.b16 %v640, %v639
          %657 = vmatprep.subr.bf16.mxu0 0
          %658 = vmatpush1.bf16.msra.mxu0 %v641
          %659 = vmatprep.subr.bf16.mxu0 0
          %660 = vmatpush1.bf16.msra.mxu0 %v642
          %661 = vmatprep.subr.bf16.mxu0 0
          %662 = vmatpush1.bf16.msra.mxu0 %v643
          %663 = vmatprep.subr.bf16.mxu0 0
          %664 = vmatpush1.bf16.msra.mxu0 %v644
          %665 = vmatprep.subr.bf16.mxu0 0
          %666 = vmatpush1.bf16.msra.mxu0 %v645
          %667 = vmatprep.subr.bf16.mxu0 0
          %668 = vmatpush1.bf16.msra.mxu0 %v646
          %669 = vmatprep.subr.bf16.mxu0 0
          %670 = vmatpush1.bf16.msra.mxu0 %v647
          %671 = vmatprep.subr.bf16.mxu0 0
          %672 = vmatpush1.bf16.msra.mxu0 %v648
          %673 = vmatprep.subr.bf16.mxu0 0
          %674 = vmatpush1.bf16.msra.mxu0 0
          %675 = vmatprep.subr.bf16.mxu0 0
          %676 = vmatpush1.bf16.msra.mxu0 0
          %677 = vmatprep.subr.bf16.mxu0 0
          %678 = vmatpush1.bf16.msra.mxu0 0
          %679 = vmatprep.subr.bf16.mxu0 0
          %680 = vmatpush1.bf16.msra.mxu0 0
          %681 = vmatprep.subr.bf16.mxu0 0
          %682 = vmatpush1.bf16.msra.mxu0 0
          %683 = vmatprep.subr.bf16.mxu0 0
          %684 = vmatpush1.bf16.msra.mxu0 0
          %685 = vmatprep.subr.bf16.mxu0 0
          %686 = vmatpush1.bf16.msra.mxu0 0
          %687 = vmatprep.subr.bf16.mxu0 0
          %688 = vmatpush1.bf16.msra.mxu0 0
          %689 = vmatprep.mubr.bf16.mxu0 0
          %690 = vmatmul.mubr.bf16.gmra.mrb[0].mxu0 %v585
          %v691 = vpop.f32.mrb[0].mxu0
          %v692 = vadd.f32 %v607, %v691
          %v693 = vpop.f32.mrb[0].mxu0
          %v694 = vpop.f32.mrb[0].mxu0
          %v695 = vadd.f32 %v607, %v694
          %v696 = vpop.f32.mrb[0].mxu0
          %697 = vdwg.mxu0
          %698 = vst [vmem:[#allocation11] sm:$0xff] %v692
          %699 = vst [vmem:[#allocation11 + $0x8] sm:$0xff] %v695
        $region72: #{tpu_custom_call.1} parent=47 // pred_fallthru
          _
        // Predicated region
        $region73: #{tpu_custom_call.1} parent=47 // pred_check
          %p700 = pneg %p204
        $region74: #{tpu_custom_call.1} parent=47 // pred_check_branch
          %702 = sbr.rel (%p700) target = $region76
        $region75: #{tpu_custom_call.1} parent=47 // pred_region
          %s703 = smul.u32 2, %s26
          %s705 = ssub.s32 256, 256
          %706 = vsyncadd [#allocation5], %s705
          %s707 = smul.addr %s703, 128
          %s708 = scalar_lea.hbm %s7, %s707
          %s709 = sshll.u32 [#allocation11], 4
          %s710 = int_to_ptr.vmem [resolvable:$true] %s709
          %715 = dma.vmem_to_hbm [thread:$0]  %s710, 256, %s708, [#allocation5], 128, 128, 8
        $region76: #{tpu_custom_call.1} parent=47 // pred_fallthru
          _
        // Predicated region
        $region77: #{tpu_custom_call.1} parent=47 // pred_check
          %p716 = pneg %p204
        $region78: #{tpu_custom_call.1} parent=47 // pred_check_branch
          %718 = sbr.rel (%p716) target = $region80
        $region79: #{tpu_custom_call.1} parent=47 // pred_region
          %719 = dma.done [#allocation5], 256
        $region80: #{tpu_custom_call.1} parent=47 // pred_fallthru
          _
      $region48: #{tpu_custom_call.1} parent=5 // pred_fallthru
        _
      %p720 = scmp.le.s32.totalorder 2, %s17
      // Predicated region
      $region81: #{tpu_custom_call.1} parent=5 // pred_check
        %p721 = pneg %p720
      $region82: #{tpu_custom_call.1} parent=5 // pred_check_branch
        %723 = sbr.rel (%p721) target = $region84
      $region83: #{tpu_custom_call.1} parent=5 // pred_region
        %s724 = ssub.s32 %s17, 2
      $region84: #{tpu_custom_call.1} parent=5 // pred_fallthru
        _
    $region6: #{tpu_custom_call.1} parent=1 // loop_footer
      %s21 = sadd.s32 1, %s17
    $region7: #{tpu_custom_call.1} parent=1 // loop_footer_branch
      %16 = sbr.rel target = $region3
    $region8: #{tpu_custom_call.1} parent=1 // loop_exit
      _
    %725 = vsyncpa [#allocation4], 1
    %s726 = scalar_lea.sflag [#allocation4], 1
    %727 = vsyncpa %s726, 1
    %728 = vsyncpa [#allocation7], 1
    %729 = vsyncpa [#allocation10], 1
    %730 = vsyncpa [#allocation5], 1
    %s731 = scalar_lea.sflag [#allocation5], 1
    %732 = vsyncpa %s731, 1

</llo_original>
